<compile_context>
chip_gen: v5e
topology: v5e:2x2
jax: 0.10.0
libtpu: 0.0.40
codegen_flags: <defaults>
</compile_context>

<pallas_src>
import jax
import jax.numpy as jnp
from jax.experimental import pallas as pl
from jax.experimental.pallas import tpu as pltpu

_LANE = 128


def _mf_kernel(u_ref, i_ref, out_ref):
    # u_ref / i_ref : (TB, H) blocks in the slabs' natural gather layout.
    # out_ref       : (TB, 1) per-example dot products.
    u = u_ref[...].astype(jnp.float32)                     # upcast is a no-op for f32
    i = i_ref[...].astype(jnp.float32)                     # (needed for bf16 on v5e)
    out_ref[...] = jnp.sum(u * i, axis=1, keepdims=True)   # VPU mul + lane reduce


def _round_up(x, m):
    return ((x + m - 1) // m) * m


def _batch_axis_semantics(grid_len):
    """Use CORE_PARALLEL on v7x (2 TensorCores/chip); plain 'parallel' elsewhere."""
    try:
        kind = jax.devices()[0].device_kind.lower()
    except Exception:
        kind = ""
    if "v7" in kind and grid_len >= 2 and grid_len % 2 == 0:
        return (pltpu.CORE_PARALLEL,)
    return ("parallel",)


def mf_forward(user_emb, item_emb, userid_input, itemid_input, *,
               tb=4096, slab_dtype=jnp.float32):
    """user_emb: (U, H) f32; item_emb: (I, H) f32; ids: (B, 1) int -> (B, 1) f32."""
    uids = userid_input.reshape(-1).astype(jnp.int32)       # (B,)
    iids = itemid_input.reshape(-1).astype(jnp.int32)       # (B,)
    B = int(uids.shape[0])
    H = int(user_emb.shape[1])

    # Clamp out-of-range ids (avoids wrong-row gather / DMA-fault semantics).
    uids = jnp.clip(uids, 0, user_emb.shape[0] - 1)
    iids = jnp.clip(iids, 0, item_emb.shape[0] - 1)

    # ---- batch-tile sizing --------------------------------------------------
    # Double-buffered VMEM footprint per batch row:
    #   2 inputs x 2 buffers x round_up(H,128) lanes x itemsize
    # + 1 output x 2 buffers x 128 lanes (padded)   x 4 B
    in_item = jnp.dtype(slab_dtype).itemsize
    padded_h = _round_up(H, _LANE)
    bytes_per_row = 2 * 2 * padded_h * in_item + 2 * _LANE * 4
    vmem_budget = 24 * 1024 * 1024                           # safe on v5e/v6e/v7x
    tb_cap = max(_LANE, (vmem_budget // bytes_per_row) // _LANE * _LANE)

    tb = max(_LANE, min(int(tb), tb_cap))
    tb = (tb // _LANE) * _LANE
    b_round = _round_up(B, _LANE)
    if b_round <= tb:                                        # whole batch in one tile
        tb = b_round
    b_pad = _round_up(B, tb)
    pad = b_pad - B

    # ---- wrapper-side gather (one XLA gather per table, NO transpose) -------
    uids_p = jnp.pad(uids, (0, pad))
    iids_p = jnp.pad(iids, (0, pad))
    u_slab = jnp.take(user_emb, uids_p, axis=0).astype(slab_dtype)   # (b_pad, H)
    i_slab = jnp.take(item_emb, iids_p, axis=0).astype(slab_dtype)   # (b_pad, H)

    grid = (b_pad // tb,)
    out = pl.pallas_call(
        _mf_kernel,
        grid=grid,
        in_specs=[
            pl.BlockSpec((tb, H), lambda g: (g, 0)),
            pl.BlockSpec((tb, H), lambda g: (g, 0)),
        ],
        out_specs=pl.BlockSpec((tb, 1), lambda g: (g, 0)),
        out_shape=jax.ShapeDtypeStruct((b_pad, 1), jnp.float32),
        compiler_params=pltpu.CompilerParams(
            dimension_semantics=_batch_axis_semantics(grid[0]),
            vmem_limit_bytes=48 * 1024 * 1024,
        ),
    )(u_slab, i_slab)

    return out[:B]                                           # (B, 1)


class MFParams:
    """Deterministic parameter construction matching MF.__init__ shapes."""

    def __init__(self, maxn, maxm, hidden_dim, key):
        self.user_size = maxn + 3
        self.item_size = maxm + 3
        self.hidden_dim = hidden_dim
        ku, ki = jax.random.split(key)
        # (rand_like(...) - 0.5) * 0.01  ->  U(-0.005, 0.005)
        self.uembedding = (jax.random.uniform(ku, (self.user_size, hidden_dim),
                                              dtype=jnp.float32) - 0.5) * 0.01
        self.iembedding = (jax.random.uniform(ki, (self.item_size, hidden_dim),
                                              dtype=jnp.float32) - 0.5) * 0.01


if __name__ == "__main__":
    key = jax.random.PRNGKey(0)
    k_params, k_uid, k_iid = jax.random.split(key, 3)

    maxn, maxm, hidden_dim, dropout_p = 13, 21, 32, 0.1  # small synthetic config
    batch = 8

    params = MFParams(maxn, maxm, hidden_dim, k_params)

    userid_input = jax.random.randint(k_uid, (batch, 1), 0, params.user_size,
                                      dtype=jnp.int32)
    itemid_input = jax.random.randint(k_iid, (batch, 1), 0, params.item_size,
                                      dtype=jnp.int32)

    pred = mf_forward(params.uembedding, params.iembedding,
                      userid_input, itemid_input)
    pred = jax.block_until_ready(pred)

    # pure-JAX reference check (eval-mode dropout == identity)
    uemb = params.uembedding[userid_input.reshape(-1)]        # (B, H)
    iemb = params.iembedding[itemid_input.reshape(-1)]        # (B, H)
    ref = jnp.sum(uemb * iemb, axis=-1, keepdims=True)        # (B, 1)
    assert pred.shape == (batch, 1)
    assert jnp.allclose(pred, ref, atol=1e-6), "mismatch vs reference"

    print("KERNEL_OK")
</pallas_src>

<mosaic_0001>
module attributes {stable_mosaic.version = 11 : i64} {
  func.func @_mf_kernel(%arg0: i32, %arg1: memref<128x32xf32, #tpu.memory_space<vmem>>, %arg2: memref<128x32xf32, #tpu.memory_space<vmem>>, %arg3: memref<128x1xf32, #tpu.memory_space<vmem>>) attributes {dimension_semantics = [#tpu.dimension_semantics<parallel>], iteration_bounds = array<i64: 1>, scalar_prefetch = 0 : i64, scratch_operands = 0 : i64, tpu.core_type = #tpu.core_type<tc>, window_params = [{transform_indices = @transform_0, window_bounds = array<i64: 128, 32>}, {transform_indices = @transform_1, window_bounds = array<i64: 128, 32>}, {transform_indices = @transform_2, window_bounds = array<i64: 128, 1>}]} {
    %c0 = arith.constant 0 : index
    %c0_0 = arith.constant 0 : index
    %0 = vector.load %arg1[%c0, %c0_0] : memref<128x32xf32, #tpu.memory_space<vmem>>, vector<128x32xf32>
    %c0_1 = arith.constant 0 : index
    %c0_2 = arith.constant 0 : index
    %1 = vector.load %arg2[%c0_1, %c0_2] : memref<128x32xf32, #tpu.memory_space<vmem>>, vector<128x32xf32>
    %2 = arith.mulf %0, %1 : vector<128x32xf32>
    %cst = arith.constant dense<0.000000e+00> : vector<128xf32>
    %3 = vector.multi_reduction <add>, %2, %cst [1] : vector<128x32xf32> to vector<128xf32>
    %4 = vector.shape_cast %3 : vector<128xf32> to vector<128x1xf32>
    %c0_3 = arith.constant 0 : index
    %c0_4 = arith.constant 0 : index
    %5 = vector.load %arg3[%c0_3, %c0_4] : memref<128x1xf32, #tpu.memory_space<vmem>>, vector<128x1xf32>
    tpu.vector_store %arg3[%c0_3, %c0_4], %4 {strides = array<i32>} : memref<128x1xf32, #tpu.memory_space<vmem>>, vector<128x1xf32>,
    return
  }
  func.func @transform_0(%arg0: i32) -> (i32, i32) {
    %c0_i32 = arith.constant 0 : i32
    %c0_i32_0 = arith.constant 0 : i32
    return %arg0, %c0_i32 : i32, i32
  }
  func.func @transform_1(%arg0: i32) -> (i32, i32) {
    %c0_i32 = arith.constant 0 : i32
    %c0_i32_0 = arith.constant 0 : i32
    return %arg0, %c0_i32 : i32, i32
  }
  func.func @transform_2(%arg0: i32) -> (i32, i32) {
    %c0_i32 = arith.constant 0 : i32
    %c0_i32_0 = arith.constant 0 : i32
    return %arg0, %c0_i32 : i32, i32
  }
}

</mosaic_0001>

<llo_original>
// kernel: tpu_custom_call.1
$region0: #{tpu_custom_call.1}
  #allocation0 [shape = 'u32[]', space=smem, size = 0x4, offset = 0x4, fixed_abs, tag = 'smem constant byte address 0x4 - core index']
  #allocation1 [shape = 'u32[72,128]{1,0:T(1,128)}', space=vmem, size = 0x9000, scoped, tag = 'internal scratch']
  %s0 = inlined_call_operand.vmem [shape: f32[128,32], index: 0, kind: input, shape index: {}]
  %s1 = inlined_call_operand.vmem [shape: f32[128,32], index: 1, kind: input, shape index: {}]
  %s2 = inlined_call_operand.vmem [shape: f32[128,1], index: 2, kind: output, shape index: {}]
  %s3 = sld [smem:[#allocation0]]
  $region18: #{tpu_custom_call.1} parent=0
    _
  %s5 = ssub.s32 1, %s3
  %s6 = scalar_select 0, %s5, %s3
  // Predicated region
  $region2: #{tpu_custom_call.1} parent=0 // pred_check
    _
  $region3: #{tpu_custom_call.1} parent=0 // pred_check_branch
    %8 = sbr.rel (0) target = $region5
  $region4: #{tpu_custom_call.1} parent=0 // pred_region
    _
  $region5: #{tpu_custom_call.1} parent=0 // pred_fallthru
    _
  // Predicated region
  $region6: #{tpu_custom_call.1} parent=0 // pred_check
    _
  $region7: #{tpu_custom_call.1} parent=0 // pred_check_branch
    %10 = sbr.rel (0) target = $region9
  $region8: #{tpu_custom_call.1} parent=0 // pred_region
    _
  $region9: #{tpu_custom_call.1} parent=0 // pred_fallthru
    _
  %v11 = vld [vmem:[%s0] sm:$0xff]
  %v12 = vld [vmem:[%s0 + $0x8] sm:$0xff]
  %v13 = vld [vmem:[%s0 + $0x10] sm:$0xff]
  %v14 = vld [vmem:[%s0 + $0x18] sm:$0xff]
  %v15 = vld [vmem:[%s0 + $0x20] sm:$0xff]
  %v16 = vld [vmem:[%s0 + $0x28] sm:$0xff]
  %v17 = vld [vmem:[%s0 + $0x30] sm:$0xff]
  %v18 = vld [vmem:[%s0 + $0x38] sm:$0xff]
  %v19 = vld [vmem:[%s0 + $0x40] sm:$0xff]
  %v20 = vld [vmem:[%s0 + $0x48] sm:$0xff]
  %v21 = vld [vmem:[%s0 + $0x50] sm:$0xff]
  %v22 = vld [vmem:[%s0 + $0x58] sm:$0xff]
  %v23 = vld [vmem:[%s0 + $0x60] sm:$0xff]
  %v24 = vld [vmem:[%s0 + $0x68] sm:$0xff]
  %v25 = vld [vmem:[%s0 + $0x70] sm:$0xff]
  %v26 = vld [vmem:[%s0 + $0x78] sm:$0xff]
  %v27 = vld [vmem:[%s1] sm:$0xff]
  %v28 = vld [vmem:[%s1 + $0x8] sm:$0xff]
  %v29 = vld [vmem:[%s1 + $0x10] sm:$0xff]
  %v30 = vld [vmem:[%s1 + $0x18] sm:$0xff]
  %v31 = vld [vmem:[%s1 + $0x20] sm:$0xff]
  %v32 = vld [vmem:[%s1 + $0x28] sm:$0xff]
  %v33 = vld [vmem:[%s1 + $0x30] sm:$0xff]
  %v34 = vld [vmem:[%s1 + $0x38] sm:$0xff]
  %v35 = vld [vmem:[%s1 + $0x40] sm:$0xff]
  %v36 = vld [vmem:[%s1 + $0x48] sm:$0xff]
  %v37 = vld [vmem:[%s1 + $0x50] sm:$0xff]
  %v38 = vld [vmem:[%s1 + $0x58] sm:$0xff]
  %v39 = vld [vmem:[%s1 + $0x60] sm:$0xff]
  %v40 = vld [vmem:[%s1 + $0x68] sm:$0xff]
  %v41 = vld [vmem:[%s1 + $0x70] sm:$0xff]
  %v42 = vld [vmem:[%s1 + $0x78] sm:$0xff]
  %v43 = vmul.f32 %v11, %v27
  %v44 = vmul.f32 %v12, %v28
  %v45 = vmul.f32 %v13, %v29
  %v46 = vmul.f32 %v14, %v30
  %v47 = vmul.f32 %v15, %v31
  %v48 = vmul.f32 %v16, %v32
  %v49 = vmul.f32 %v17, %v33
  %v50 = vmul.f32 %v18, %v34
  %v51 = vmul.f32 %v19, %v35
  %v52 = vmul.f32 %v20, %v36
  %v53 = vmul.f32 %v21, %v37
  %v54 = vmul.f32 %v22, %v38
  %v55 = vmul.f32 %v23, %v39
  %v56 = vmul.f32 %v24, %v40
  %v57 = vmul.f32 %v25, %v41
  %v58 = vmul.f32 %v26, %v42
  %vm59 = vcmask 261120
  %v60 = vsel %vm59, %v43, 0.0
  %61 = vadd.xlane.f32.xlu0 %v60
  %v62 = vpop.xlane.xlu0 %61
  %v63 = vsel %vm59, %v44, 0.0
  %64 = vadd.xlane.f32.xlu0 %v63
  %v65 = vpop.xlane.xlu0 %64
  %v66 = vsel %vm59, %v45, 0.0
  %67 = vadd.xlane.f32.xlu0 %v66
  %v68 = vpop.xlane.xlu0 %67
  %v69 = vsel %vm59, %v46, 0.0
  %70 = vadd.xlane.f32.xlu0 %v69
  %v71 = vpop.xlane.xlu0 %70
  %v72 = vsel %vm59, %v47, 0.0
  %73 = vadd.xlane.f32.xlu0 %v72
  %v74 = vpop.xlane.xlu0 %73
  %v75 = vsel %vm59, %v48, 0.0
  %76 = vadd.xlane.f32.xlu0 %v75
  %v77 = vpop.xlane.xlu0 %76
  %v78 = vsel %vm59, %v49, 0.0
  %79 = vadd.xlane.f32.xlu0 %v78
  %v80 = vpop.xlane.xlu0 %79
  %v81 = vsel %vm59, %v50, 0.0
  %82 = vadd.xlane.f32.xlu0 %v81
  %v83 = vpop.xlane.xlu0 %82
  %v84 = vsel %vm59, %v51, 0.0
  %85 = vadd.xlane.f32.xlu0 %v84
  %v86 = vpop.xlane.xlu0 %85
  %v87 = vsel %vm59, %v52, 0.0
  %88 = vadd.xlane.f32.xlu0 %v87
  %v89 = vpop.xlane.xlu0 %88
  %v90 = vsel %vm59, %v53, 0.0
  %91 = vadd.xlane.f32.xlu0 %v90
  %v92 = vpop.xlane.xlu0 %91
  %v93 = vsel %vm59, %v54, 0.0
  %94 = vadd.xlane.f32.xlu0 %v93
  %v95 = vpop.xlane.xlu0 %94
  %v96 = vsel %vm59, %v55, 0.0
  %97 = vadd.xlane.f32.xlu0 %v96
  %v98 = vpop.xlane.xlu0 %97
  %v99 = vsel %vm59, %v56, 0.0
  %100 = vadd.xlane.f32.xlu0 %v99
  %v101 = vpop.xlane.xlu0 %100
  %v102 = vsel %vm59, %v57, 0.0
  %103 = vadd.xlane.f32.xlu0 %v102
  %v104 = vpop.xlane.xlu0 %103
  %v105 = vsel %vm59, %v58, 0.0
  %106 = vadd.xlane.f32.xlu0 %v105
  %v107 = vpop.xlane.xlu0 %106
  %vm108 = vcmask 7168
  %109 = vst.msk [vmem:[%s2] sm:$0xff] %vm108, %v62
  %110 = vst.msk [vmem:[%s2 + $0x8] sm:$0xff] %vm108, %v65
  %111 = vst.msk [vmem:[%s2 + $0x10] sm:$0xff] %vm108, %v68
  %112 = vst.msk [vmem:[%s2 + $0x18] sm:$0xff] %vm108, %v71
  %113 = vst.msk [vmem:[%s2 + $0x20] sm:$0xff] %vm108, %v74
  %114 = vst.msk [vmem:[%s2 + $0x28] sm:$0xff] %vm108, %v77
  %115 = vst.msk [vmem:[%s2 + $0x30] sm:$0xff] %vm108, %v80
  %116 = vst.msk [vmem:[%s2 + $0x38] sm:$0xff] %vm108, %v83
  %117 = vst.msk [vmem:[%s2 + $0x40] sm:$0xff] %vm108, %v86
  %118 = vst.msk [vmem:[%s2 + $0x48] sm:$0xff] %vm108, %v89
  %119 = vst.msk [vmem:[%s2 + $0x50] sm:$0xff] %vm108, %v92
  %120 = vst.msk [vmem:[%s2 + $0x58] sm:$0xff] %vm108, %v95
  %121 = vst.msk [vmem:[%s2 + $0x60] sm:$0xff] %vm108, %v98
  %122 = vst.msk [vmem:[%s2 + $0x68] sm:$0xff] %vm108, %v101
  %123 = vst.msk [vmem:[%s2 + $0x70] sm:$0xff] %vm108, %v104
  %124 = vst.msk [vmem:[%s2 + $0x78] sm:$0xff] %vm108, %v107
  // Predicated region
  $region10: #{tpu_custom_call.1} parent=0 // pred_check
    _
  $region11: #{tpu_custom_call.1} parent=0 // pred_check_branch
    %126 = sbr.rel (0) target = $region13
  $region12: #{tpu_custom_call.1} parent=0 // pred_region
    _
  $region13: #{tpu_custom_call.1} parent=0 // pred_fallthru
    _
  // Predicated region
  $region14: #{tpu_custom_call.1} parent=0 // pred_check
    _
  $region15: #{tpu_custom_call.1} parent=0 // pred_check_branch
    %128 = sbr.rel (0) target = $region17
  $region16: #{tpu_custom_call.1} parent=0 // pred_region
    _
  $region17: #{tpu_custom_call.1} parent=0 // pred_fallthru
    _

</llo_original>
